<compile_context>
chip_gen: v6e
topology: v6e:2x2x1
jax: 0.10.0
libtpu: 0.0.40
codegen_flags: <defaults>
</compile_context>

<pallas_src>
import functools

import jax
import jax.numpy as jnp
from jax import lax
from jax.experimental import pallas as pl
from jax.experimental.pallas import tpu as pltpu

_LANE = 128
_EPS = 1e-12  # F.normalize default eps


def _round_up(x, m):
    return ((x + m - 1) // m) * m


def _cdiv(a, b):
    return -(-a // b)


def _partials_kernel(o1_ref, o2_ref, dot_ref, n1_ref, n2_ref, *,
                     tile_d, n_d_inner, d_valid, needs_mask):
    """Process one (rows, tile_d) tile: lane-reduce it immediately and
    accumulate the (rows, 1) partial sums into the d-resident output blocks."""
    s = pl.program_id(0)   # D shard (keeps both v7x TensorCores busy)
    d = pl.program_id(2)   # reduction step within the shard

    @pl.when(d == 0)
    def _init():
        dot_ref[...] = jnp.zeros_like(dot_ref)
        n1_ref[...] = jnp.zeros_like(n1_ref)
        n2_ref[...] = jnp.zeros_like(n2_ref)

    o1 = o1_ref[...].astype(jnp.float32)
    o2 = o2_ref[...].astype(jnp.float32)

    if needs_mask:
        # The last D tile may extend past the true feature width: zero the
        # out-of-bounds lanes (they contain garbage, not zeros).
        col0 = (s * n_d_inner + d) * tile_d
        cols = col0 + lax.broadcasted_iota(jnp.int32, o1.shape, 1)
        keep = cols < d_valid
        o1 = jnp.where(keep, o1, 0.0)
        o2 = jnp.where(keep, o2, 0.0)

    # Per-tile XLU reductions are free filler on a memory-bound stream.
    dot_ref[...] += jnp.sum(o1 * o2, axis=1, keepdims=True)
    n1_ref[...] += jnp.sum(o1 * o1, axis=1, keepdims=True)
    n2_ref[...] += jnp.sum(o2 * o2, axis=1, keepdims=True)


def _vmem_limit_bytes():
    try:
        cap = int(pltpu.get_tpu_info().vmem_capacity_bytes)
    except Exception:
        cap = 64 * 1024 * 1024  # conservative: v7x per-TC VMEM
    # 25% headroom; <= ~48 MiB on v7x (64 MiB), <= 96 MiB on v5e/v6e (128 MiB).
    return max(16 * 1024 * 1024, min(cap - cap // 4, 96 * 1024 * 1024))


def _plan_cols(total_cols, parts, max_cols):
    """Tile width / tiles-per-shard for splitting `total_cols` into `parts`."""
    shard = _round_up(_cdiv(total_cols, parts), _LANE)
    n_in = max(1, _cdiv(shard, max_cols))
    tile = _round_up(_cdiv(shard, n_in), _LANE)
    return tile, _cdiv(shard, tile)


def contrastive_loss(output1, output2, label, margin=2.0):
    """Pallas ContrastiveLoss.forward: mean((cos_sim(o1, o2) - label)^2).

    output1, output2: any shape with leading batch dim B (e.g. (B, C, H, W)).
    label: shape (B,).
    Note: `margin` is unused in the reference forward pass (kept for parity).
    """
    B = output1.shape[0]
    o1 = output1.reshape(B, -1)
    o2 = output2.reshape(B, -1)
    D = o1.shape[1]
    itemsize = jnp.dtype(o1.dtype).itemsize

    # --- batch (row) tiling: no padding; a partial last chunk only pollutes
    # rows that are never written back. ---------------------------------------
    b_tile = min(B, 256)
    n_b = _cdiv(B, b_tile)

    # --- D (column) tiling from a generation-aware VMEM budget. --------------
    vmem_limit = _vmem_limit_bytes()
    budget = min(24 * 1024 * 1024, vmem_limit // 2)
    sub = 8 * max(1, 4 // itemsize)            # sublane tile: 8 f32 / 16 bf16
    rows_phys = _round_up(b_tile, sub)
    # 2 inputs x 2 pipeline buffers + allowance for ~4 tile-wide f32 temps.
    bytes_per_col = (2 * 2 * itemsize + 4 * 4) * rows_phys
    max_cols = max(_LANE, (budget // bytes_per_col) // _LANE * _LANE)

    # Split D across a size-2 leading parallel axis when there is only one
    # batch chunk, so both v7x TensorCores participate.
    want_split = (n_b == 1 and D > 2 * _LANE)
    if D <= max_cols and not want_split:
        n_split, tile_d, n_d_inner = 1, D, 1   # one full-width block, no mask
    else:
        n_split = 2 if want_split else 1
        tile_d, n_d_inner = _plan_cols(D, n_split, max_cols)
        if n_split == 2 and (2 * n_d_inner - 1) * tile_d >= D:
            # would create a fully dead (duplicate-read) tile: don't split
            n_split = 1
            tile_d, n_d_inner = _plan_cols(D, 1, max_cols)
            if n_d_inner == 1:
                tile_d = D
    needs_mask = n_split * n_d_inner * tile_d > D

    grid = (n_split, n_b, n_d_inner)
    in_spec = pl.BlockSpec((b_tile, tile_d),
                           lambda s, b, d: (b, s * n_d_inner + d))
    out_spec = pl.BlockSpec((None, b_tile, 1), lambda s, b, d: (s, b, 0))
    out_sds = jax.ShapeDtypeStruct((n_split, B, 1), jnp.float32)

    kernel = functools.partial(_partials_kernel, tile_d=tile_d,
                               n_d_inner=n_d_inner, d_valid=D,
                               needs_mask=needs_mask)

    dot, n1sq, n2sq = pl.pallas_call(
        kernel,
        out_shape=[out_sds, out_sds, out_sds],
        grid_spec=pltpu.PrefetchScalarGridSpec(
            num_scalar_prefetch=0,
            grid=grid,
            in_specs=[in_spec, in_spec],
            out_specs=[out_spec, out_spec, out_spec],
        ),
        compiler_params=pltpu.CompilerParams(
            dimension_semantics=("parallel", "parallel", "arbitrary"),
            vmem_limit_bytes=int(vmem_limit),
        ),
        cost_estimate=pl.CostEstimate(
            flops=6 * B * D,
            transcendentals=0,
            bytes_accessed=2 * B * D * itemsize + 3 * n_split * B * 4,
        ),
    )(o1, o2)

    # O(B) epilogue: combine D shards, eps-clamped cosine distance, MSE.
    dot = jnp.sum(dot, axis=0)[:, 0]
    n1sq = jnp.sum(n1sq, axis=0)[:, 0]
    n2sq = jnp.sum(n2sq, axis=0)[:, 0]
    eps2 = jnp.float32(_EPS) ** 2
    inv_norm = lax.rsqrt(jnp.maximum(n1sq, eps2)) * lax.rsqrt(jnp.maximum(n2sq, eps2))
    distance = dot * inv_norm
    diff = distance - label.reshape(B).astype(jnp.float32)
    return jnp.mean(diff * diff)


def _reference_loss(output1, output2, label):
    B = output1.shape[0]
    a = output1.reshape(B, -1).astype(jnp.float32)
    b = output2.reshape(B, -1).astype(jnp.float32)
    eps = 1e-12
    a = a / jnp.maximum(jnp.linalg.norm(a, axis=1, keepdims=True), eps)
    b = b / jnp.maximum(jnp.linalg.norm(b, axis=1, keepdims=True), eps)
    d = jnp.sum(a * b, axis=1)
    return jnp.mean((d - label.astype(jnp.float32)) ** 2)


if __name__ == "__main__":
    key = jax.random.PRNGKey(0)
    k1, k2, k3 = jax.random.split(key, 3)

    B, C, H, W = 2, 4, 16, 16  # small NCHW feature maps
    output1 = jax.random.normal(k1, (B, C, H, W), dtype=jnp.float32)
    output2 = jax.random.normal(k2, (B, C, H, W), dtype=jnp.float32)
    # Siamese-style binary labels (0 = similar, 1 = dissimilar)
    label = jax.random.bernoulli(k3, 0.5, (B,)).astype(jnp.float32)

    loss = contrastive_loss(output1, output2, label)
    loss = jax.block_until_ready(loss)

    ref = _reference_loss(output1, output2, label)
    assert jnp.allclose(loss, ref, rtol=1e-4, atol=1e-6), (loss, ref)

    print("KERNEL_OK")
</pallas_src>

<mosaic_0001>
module attributes {stable_mosaic.version = 11 : i64} {
  func.func @_partials_kernel(%arg0: i32, %arg1: i32, %arg2: i32, %arg3: memref<2x512xf32, #tpu.memory_space<vmem>>, %arg4: memref<2x512xf32, #tpu.memory_space<vmem>>, %arg5: memref<1x2x1xf32, #tpu.memory_space<vmem>>, %arg6: memref<1x2x1xf32, #tpu.memory_space<vmem>>, %arg7: memref<1x2x1xf32, #tpu.memory_space<vmem>>) attributes {dimension_semantics = [#tpu.dimension_semantics<parallel>, #tpu.dimension_semantics<parallel>, #tpu.dimension_semantics<arbitrary>], iteration_bounds = array<i64: 2, 1, 1>, scalar_prefetch = 0 : i64, scratch_operands = 0 : i64, tpu.core_type = #tpu.core_type<tc>, window_params = [{transform_indices = @transform_0, window_bounds = array<i64: 2, 512>}, {transform_indices = @transform_1, window_bounds = array<i64: 2, 512>}, {transform_indices = @transform_2, window_bounds = array<i64: 1, 2, 1>}, {transform_indices = @transform_3, window_bounds = array<i64: 1, 2, 1>}, {transform_indices = @transform_4, window_bounds = array<i64: 1, 2, 1>}]} {
    %c0_i32 = arith.constant 0 : i32
    %0 = arith.cmpi eq, %arg2, %c0_i32 : i32
    %1 = arith.extui %0 : i1 to i32
    %c0_i32_0 = arith.constant 0 : i32
    %2 = arith.cmpi ne, %1, %c0_i32_0 : i32
    scf.if %2 {
      %cst_24 = arith.constant 0.000000e+00 : f32
      %32 = vector.broadcast %cst_24 : f32 to vector<2x1xf32>
      %c0_25 = arith.constant 0 : index
      %c0_26 = arith.constant 0 : index
      %c0_27 = arith.constant 0 : index
      %33 = vector.load %arg5[%c0_25, %c0_26, %c0_27] : memref<1x2x1xf32, #tpu.memory_space<vmem>>, vector<1x2x1xf32>
      %34 = vector.shape_cast %33 : vector<1x2x1xf32> to vector<2x1xf32>
      %35 = vector.shape_cast %32 : vector<2x1xf32> to vector<1x2x1xf32>
      tpu.vector_store %arg5[%c0_25, %c0_26, %c0_27], %35 {strides = array<i32>} : memref<1x2x1xf32, #tpu.memory_space<vmem>>, vector<1x2x1xf32>,
      %cst_28 = arith.constant 0.000000e+00 : f32
      %36 = vector.broadcast %cst_28 : f32 to vector<2x1xf32>
      %c0_29 = arith.constant 0 : index
      %c0_30 = arith.constant 0 : index
      %c0_31 = arith.constant 0 : index
      %37 = vector.load %arg6[%c0_29, %c0_30, %c0_31] : memref<1x2x1xf32, #tpu.memory_space<vmem>>, vector<1x2x1xf32>
      %38 = vector.shape_cast %37 : vector<1x2x1xf32> to vector<2x1xf32>
      %39 = vector.shape_cast %36 : vector<2x1xf32> to vector<1x2x1xf32>
      tpu.vector_store %arg6[%c0_29, %c0_30, %c0_31], %39 {strides = array<i32>} : memref<1x2x1xf32, #tpu.memory_space<vmem>>, vector<1x2x1xf32>,
      %cst_32 = arith.constant 0.000000e+00 : f32
      %40 = vector.broadcast %cst_32 : f32 to vector<2x1xf32>
      %c0_33 = arith.constant 0 : index
      %c0_34 = arith.constant 0 : index
      %c0_35 = arith.constant 0 : index
      %41 = vector.load %arg7[%c0_33, %c0_34, %c0_35] : memref<1x2x1xf32, #tpu.memory_space<vmem>>, vector<1x2x1xf32>
      %42 = vector.shape_cast %41 : vector<1x2x1xf32> to vector<2x1xf32>
      %43 = vector.shape_cast %40 : vector<2x1xf32> to vector<1x2x1xf32>
      tpu.vector_store %arg7[%c0_33, %c0_34, %c0_35], %43 {strides = array<i32>} : memref<1x2x1xf32, #tpu.memory_space<vmem>>, vector<1x2x1xf32>,
    } else {
    }
    %c0 = arith.constant 0 : index
    %c0_1 = arith.constant 0 : index
    %3 = vector.load %arg3[%c0, %c0_1] : memref<2x512xf32, #tpu.memory_space<vmem>>, vector<2x512xf32>
    %c0_2 = arith.constant 0 : index
    %c0_3 = arith.constant 0 : index
    %4 = vector.load %arg4[%c0_2, %c0_3] : memref<2x512xf32, #tpu.memory_space<vmem>>, vector<2x512xf32>
    %c0_4 = arith.constant 0 : index
    %c0_5 = arith.constant 0 : index
    %c0_6 = arith.constant 0 : index
    %5 = vector.load %arg5[%c0_4, %c0_5, %c0_6] : memref<1x2x1xf32, #tpu.memory_space<vmem>>, vector<1x2x1xf32>
    %6 = vector.shape_cast %5 : vector<1x2x1xf32> to vector<2x1xf32>
    %7 = arith.mulf %3, %4 : vector<2x512xf32>
    %cst = arith.constant dense<0.000000e+00> : vector<2xf32>
    %8 = vector.multi_reduction <add>, %7, %cst [1] : vector<2x512xf32> to vector<2xf32>
    %9 = vector.shape_cast %8 : vector<2xf32> to vector<2x1xf32>
    %10 = arith.addf %6, %9 : vector<2x1xf32>
    %c0_7 = arith.constant 0 : index
    %c0_8 = arith.constant 0 : index
    %c0_9 = arith.constant 0 : index
    %11 = vector.load %arg5[%c0_7, %c0_8, %c0_9] : memref<1x2x1xf32, #tpu.memory_space<vmem>>, vector<1x2x1xf32>
    %12 = vector.shape_cast %11 : vector<1x2x1xf32> to vector<2x1xf32>
    %13 = vector.shape_cast %10 : vector<2x1xf32> to vector<1x2x1xf32>
    tpu.vector_store %arg5[%c0_7, %c0_8, %c0_9], %13 {strides = array<i32>} : memref<1x2x1xf32, #tpu.memory_space<vmem>>, vector<1x2x1xf32>,
    %c0_10 = arith.constant 0 : index
    %c0_11 = arith.constant 0 : index
    %c0_12 = arith.constant 0 : index
    %14 = vector.load %arg6[%c0_10, %c0_11, %c0_12] : memref<1x2x1xf32, #tpu.memory_space<vmem>>, vector<1x2x1xf32>
    %15 = vector.shape_cast %14 : vector<1x2x1xf32> to vector<2x1xf32>
    %16 = arith.mulf %3, %3 : vector<2x512xf32>
    %cst_13 = arith.constant dense<0.000000e+00> : vector<2xf32>
    %17 = vector.multi_reduction <add>, %16, %cst_13 [1] : vector<2x512xf32> to vector<2xf32>
    %18 = vector.shape_cast %17 : vector<2xf32> to vector<2x1xf32>
    %19 = arith.addf %15, %18 : vector<2x1xf32>
    %c0_14 = arith.constant 0 : index
    %c0_15 = arith.constant 0 : index
    %c0_16 = arith.constant 0 : index
    %20 = vector.load %arg6[%c0_14, %c0_15, %c0_16] : memref<1x2x1xf32, #tpu.memory_space<vmem>>, vector<1x2x1xf32>
    %21 = vector.shape_cast %20 : vector<1x2x1xf32> to vector<2x1xf32>
    %22 = vector.shape_cast %19 : vector<2x1xf32> to vector<1x2x1xf32>
    tpu.vector_store %arg6[%c0_14, %c0_15, %c0_16], %22 {strides = array<i32>} : memref<1x2x1xf32, #tpu.memory_space<vmem>>, vector<1x2x1xf32>,
    %c0_17 = arith.constant 0 : index
    %c0_18 = arith.constant 0 : index
    %c0_19 = arith.constant 0 : index
    %23 = vector.load %arg7[%c0_17, %c0_18, %c0_19] : memref<1x2x1xf32, #tpu.memory_space<vmem>>, vector<1x2x1xf32>
    %24 = vector.shape_cast %23 : vector<1x2x1xf32> to vector<2x1xf32>
    %25 = arith.mulf %4, %4 : vector<2x512xf32>
    %cst_20 = arith.constant dense<0.000000e+00> : vector<2xf32>
    %26 = vector.multi_reduction <add>, %25, %cst_20 [1] : vector<2x512xf32> to vector<2xf32>
    %27 = vector.shape_cast %26 : vector<2xf32> to vector<2x1xf32>
    %28 = arith.addf %24, %27 : vector<2x1xf32>
    %c0_21 = arith.constant 0 : index
    %c0_22 = arith.constant 0 : index
    %c0_23 = arith.constant 0 : index
    %29 = vector.load %arg7[%c0_21, %c0_22, %c0_23] : memref<1x2x1xf32, #tpu.memory_space<vmem>>, vector<1x2x1xf32>
    %30 = vector.shape_cast %29 : vector<1x2x1xf32> to vector<2x1xf32>
    %31 = vector.shape_cast %28 : vector<2x1xf32> to vector<1x2x1xf32>
    tpu.vector_store %arg7[%c0_21, %c0_22, %c0_23], %31 {strides = array<i32>} : memref<1x2x1xf32, #tpu.memory_space<vmem>>, vector<1x2x1xf32>,
    return
  }
  func.func @transform_0(%arg0: i32, %arg1: i32, %arg2: i32) -> (i32, i32) {
    %c1_i32 = arith.constant 1 : i32
    %0 = arith.muli %arg0, %c1_i32 : i32
    %1 = arith.addi %0, %arg2 : i32
    %c0_i32 = arith.constant 0 : i32
    return %arg1, %1 : i32, i32
  }
  func.func @transform_1(%arg0: i32, %arg1: i32, %arg2: i32) -> (i32, i32) {
    %c1_i32 = arith.constant 1 : i32
    %0 = arith.muli %arg0, %c1_i32 : i32
    %1 = arith.addi %0, %arg2 : i32
    %c0_i32 = arith.constant 0 : i32
    return %arg1, %1 : i32, i32
  }
  func.func @transform_2(%arg0: i32, %arg1: i32, %arg2: i32) -> (i32, i32, i32) {
    %c0_i32 = arith.constant 0 : i32
    %c0_i32_0 = arith.constant 0 : i32
    return %arg0, %arg1, %c0_i32 : i32, i32, i32
  }
  func.func @transform_3(%arg0: i32, %arg1: i32, %arg2: i32) -> (i32, i32, i32) {
    %c0_i32 = arith.constant 0 : i32
    %c0_i32_0 = arith.constant 0 : i32
    return %arg0, %arg1, %c0_i32 : i32, i32, i32
  }
  func.func @transform_4(%arg0: i32, %arg1: i32, %arg2: i32) -> (i32, i32, i32) {
    %c0_i32 = arith.constant 0 : i32
    %c0_i32_0 = arith.constant 0 : i32
    return %arg0, %arg1, %c0_i32 : i32, i32, i32
  }
}

</mosaic_0001>

<llo_original>
// kernel: tpu_custom_call.1
$region0: #{tpu_custom_call.1}
  #allocation0 [shape = 'u32[]', space=smem, size = 0x4, offset = 0x4, fixed_abs, tag = 'smem constant byte address 0x4 - core index']
  #allocation1 [shape = 'u32[144,128]{1,0:T(1,128)}', space=vmem, size = 0x12000, scoped, tag = 'internal scratch']
  %s0 = inlined_call_operand.hbm [shape: f32[2,1024], index: 0, kind: input, shape index: {}]
  %s1 = inlined_call_operand.hbm [shape: f32[2,1024], index: 1, kind: input, shape index: {}]
  %s2 = inlined_call_operand.vmem [shape: f32[2,2,1], index: 2, kind: output, shape index: {0}]
  %s3 = inlined_call_operand.vmem [shape: f32[2,2,1], index: 3, kind: output, shape index: {1}]
  %s4 = inlined_call_operand.vmem [shape: f32[2,2,1], index: 4, kind: output, shape index: {2}]
  %5 = xla_tuple %s2, %s3, %s4
  %s6 = sld [smem:[#allocation0]]
  $region69: #{tpu_custom_call.1} parent=0
    _
  %s8 = ssub.s32 1, %s6
  %s9 = scalar_select 0, %s8, %s6
  $region1: #{tpu_custom_call.1} parent=0
    #allocation2 [shape = 'u8[8192]{0}', space=vmem, size = 0x2000, scoped, tag = 'input window, operand 0']
    #allocation3 [shape = 's32[2]{0}', space=sflag, size = 0x8, scoped, tag = 'scoped memory for tpu_custom_call.1']
    #allocation4 [shape = 'u8[8192]{0}', space=vmem, size = 0x2000, scoped, tag = 'input window, operand 1']
    #allocation5 [shape = 's32[2]{0}', space=sflag, size = 0x8, scoped, tag = 'scoped memory for tpu_custom_call.1']
    %10 = vsyncpa [#allocation3], 0
    %s11 = scalar_lea.sflag [#allocation3], 1
    %12 = vsyncpa %s11, 0
    %13 = vsyncpa [#allocation5], 0
    %s14 = scalar_lea.sflag [#allocation5], 1
    %15 = vsyncpa %s14, 0
    loop: start=0, step=1, limit=4
    $region2: #{tpu_custom_call.1} parent=1 // loop_pre_header
      _
    $region3: #{tpu_custom_call.1} parent=1 // loop_header
      %s17 = sphi 0, %s21
      %p18 = scmp.ge.s32.totalorder %s17, 4
      %s24 = sphi 0, %s43
      %s25 = sphi 0, %s39
      %s26 = sphi 0, %s35
      %s27 = sphi 0, %s24
      %s28 = sphi 0, %s25
      %s29 = sphi 0, %s26
      %s30 = sphi 0, %s27
      %s31 = sphi 0, %s28
      %s32 = sphi 0, %s29
      %s50 = sphi 0, %s52
      %s53 = sphi 0, %s50
      %s54 = sphi 0, %s53
      %s70 = sphi 0, %s54
      %s80 = sphi 0, %s82
      %s83 = sphi 0, %s80
      %s84 = sphi 0, %s83
      %s100 = sphi 0, %s84
      %s108 = sphi 0, %s110
      %s111 = sphi 0, %s108
      %s112 = sphi 0, %s111
      %s128 = sphi 0, %s112
      %s136 = sphi 0, %s138
      %s139 = sphi 0, %s136
      %s140 = sphi 0, %s139
      %s156 = sphi 0, %s140
      %s164 = sphi 0, %s166
      %s167 = sphi 0, %s164
      %s168 = sphi 0, %s167
      %s184 = sphi 0, %s168
    $region4: #{tpu_custom_call.1} parent=1 // loop_header_branch
      %20 = sbr.rel (%p18) target = $region8
    $region5: #{tpu_custom_call.1} parent=1 // loop_body
      %s22 = ssub.s32 %s17, 1
      %s23 = ssub.s32 %s17, 2
      %s33 = sadd.s32 1, %s26
      %p34 = scmp.ge.s32.totalorder %s33, 1
      %s35 = scalar_select %p34, 0, %s33
      %s36 = sadd.s32 1, %s25
      %s37 = scalar_select %p34, %s36, %s25
      %p38 = scmp.ge.s32.totalorder %s37, 1
      %s39 = scalar_select %p38, 0, %s37
      %s40 = sadd.s32 1, %s24
      %s41 = scalar_select %p38, %s40, %s24
      %p42 = scmp.ge.s32.totalorder %s41, 2
      %s43 = scalar_select %p42, 0, %s41
      %s44 = sadd.s32 %s24, %s26
      %s45 = sadd.s32 %s43, %s35
      %s46 = ssub.s32 %s25, %s39
      %s47 = ssub.s32 %s44, %s45
      %s48 = sor.u32 %s46, %s47
      %p49 = scmp.eq.s32.totalorder %s48, 0
      %s51 = sadd.s32 %s50, 1
      %s52 = scalar_select %p49, %s50, %s51
      %p55 = pneg %p49
      %p56 = scmp.eq.s32.totalorder %s17, 1
      %p57 = por %p55, %p56
      %p58 = scmp.ne.s32.totalorder %s50, %s53
      %p59 = scmp.eq.s32.totalorder %s17, 0
      %p60 = por %p58, %p59
      %p61 = scmp.ne.s32.totalorder %s50, %s53
      %p62 = scmp.eq.s32.totalorder %s22, 1
      %p63 = por %p61, %p62
      %p64 = scmp.ne.s32.totalorder %s53, %s54
      %p65 = scmp.eq.s32.totalorder %s22, 0
      %p66 = por %p64, %p65
      %p67 = scmp.ne.s32.totalorder %s53, %s54
      %p68 = scmp.eq.s32.totalorder %s23, 1
      %p69 = por %p67, %p68
      %p71 = scmp.ne.s32.totalorder %s54, %s70
      %p72 = scmp.eq.s32.totalorder %s23, 0
      %p73 = por %p71, %p72
      %s74 = sadd.s32 %s24, %s26
      %s75 = sadd.s32 %s43, %s35
      %s76 = ssub.s32 %s25, %s39
      %s77 = ssub.s32 %s74, %s75
      %s78 = sor.u32 %s76, %s77
      %p79 = scmp.eq.s32.totalorder %s78, 0
      %s81 = sadd.s32 %s80, 1
      %s82 = scalar_select %p79, %s80, %s81
      %p85 = pneg %p79
      %p86 = scmp.eq.s32.totalorder %s17, 1
      %p87 = por %p85, %p86
      %p88 = scmp.ne.s32.totalorder %s80, %s83
      %p89 = scmp.eq.s32.totalorder %s17, 0
      %p90 = por %p88, %p89
      %p91 = scmp.ne.s32.totalorder %s80, %s83
      %p92 = scmp.eq.s32.totalorder %s22, 1
      %p93 = por %p91, %p92
      %p94 = scmp.ne.s32.totalorder %s83, %s84
      %p95 = scmp.eq.s32.totalorder %s22, 0
      %p96 = por %p94, %p95
      %p97 = scmp.ne.s32.totalorder %s83, %s84
      %p98 = scmp.eq.s32.totalorder %s23, 1
      %p99 = por %p97, %p98
      %p101 = scmp.ne.s32.totalorder %s84, %s100
      %p102 = scmp.eq.s32.totalorder %s23, 0
      %p103 = por %p101, %p102
      %s104 = ssub.s32 %s24, %s43
      %s105 = ssub.s32 %s25, %s39
      %s106 = sor.u32 %s104, %s105
      %p107 = scmp.eq.s32.totalorder %s106, 0
      %s109 = sadd.s32 %s108, 1
      %s110 = scalar_select %p107, %s108, %s109
      %p113 = pneg %p107
      %p114 = scmp.eq.s32.totalorder %s17, 1
      %p115 = por %p113, %p114
      %p116 = scmp.ne.s32.totalorder %s108, %s111
      %p117 = scmp.eq.s32.totalorder %s17, 0
      %p118 = por %p116, %p117
      %p119 = scmp.ne.s32.totalorder %s108, %s111
      %p120 = scmp.eq.s32.totalorder %s22, 1
      %p121 = por %p119, %p120
      %p122 = scmp.ne.s32.totalorder %s111, %s112
      %p123 = scmp.eq.s32.totalorder %s22, 0
      %p124 = por %p122, %p123
      %p125 = scmp.ne.s32.totalorder %s111, %s112
      %p126 = scmp.eq.s32.totalorder %s23, 1
      %p127 = por %p125, %p126
      %p129 = scmp.ne.s32.totalorder %s112, %s128
      %p130 = scmp.eq.s32.totalorder %s23, 0
      %p131 = por %p129, %p130
      %s132 = ssub.s32 %s24, %s43
      %s133 = ssub.s32 %s25, %s39
      %s134 = sor.u32 %s132, %s133
      %p135 = scmp.eq.s32.totalorder %s134, 0
      %s137 = sadd.s32 %s136, 1
      %s138 = scalar_select %p135, %s136, %s137
      %p141 = pneg %p135
      %p142 = scmp.eq.s32.totalorder %s17, 1
      %p143 = por %p141, %p142
      %p144 = scmp.ne.s32.totalorder %s136, %s139
      %p145 = scmp.eq.s32.totalorder %s17, 0
      %p146 = por %p144, %p145
      %p147 = scmp.ne.s32.totalorder %s136, %s139
      %p148 = scmp.eq.s32.totalorder %s22, 1
      %p149 = por %p147, %p148
      %p150 = scmp.ne.s32.totalorder %s139, %s140
      %p151 = scmp.eq.s32.totalorder %s22, 0
      %p152 = por %p150, %p151
      %p153 = scmp.ne.s32.totalorder %s139, %s140
      %p154 = scmp.eq.s32.totalorder %s23, 1
      %p155 = por %p153, %p154
      %p157 = scmp.ne.s32.totalorder %s140, %s156
      %p158 = scmp.eq.s32.totalorder %s23, 0
      %p159 = por %p157, %p158
      %s160 = ssub.s32 %s24, %s43
      %s161 = ssub.s32 %s25, %s39
      %s162 = sor.u32 %s160, %s161
      %p163 = scmp.eq.s32.totalorder %s162, 0
      %s165 = sadd.s32 %s164, 1
      %s166 = scalar_select %p163, %s164, %s165
      %p169 = pneg %p163
      %p170 = scmp.eq.s32.totalorder %s17, 1
      %p171 = por %p169, %p170
      %p172 = scmp.ne.s32.totalorder %s164, %s167
      %p173 = scmp.eq.s32.totalorder %s17, 0
      %p174 = por %p172, %p173
      %p175 = scmp.ne.s32.totalorder %s164, %s167
      %p176 = scmp.eq.s32.totalorder %s22, 1
      %p177 = por %p175, %p176
      %p178 = scmp.ne.s32.totalorder %s167, %s168
      %p179 = scmp.eq.s32.totalorder %s22, 0
      %p180 = por %p178, %p179
      %p181 = scmp.ne.s32.totalorder %s167, %s168
      %p182 = scmp.eq.s32.totalorder %s23, 1
      %p183 = por %p181, %p182
      %p185 = scmp.ne.s32.totalorder %s168, %s184
      %p186 = scmp.eq.s32.totalorder %s23, 0
      %p187 = por %p185, %p186
      %p188 = scmp.le.s32.totalorder 1, %s17
      %p189 = scmp.lt.s32.totalorder %s17, 3
      %p190 = pnand %p188, %p189
      %p191 = pneg %p190
      // Predicated region
      $region9: #{tpu_custom_call.1} parent=5 // pred_check
        _
      $region10: #{tpu_custom_call.1} parent=5 // pred_check_branch
        %193 = sbr.rel (%p190) target = $region12
      $region11: #{tpu_custom_call.1} parent=5 // pred_region
        %s194 = ssub.s32 %s17, 1
      $region12: #{tpu_custom_call.1} parent=5 // pred_fallthru
        _
      %p195 = scmp.lt.s32.totalorder %s17, 2
      // Predicated region
      $region13: #{tpu_custom_call.1} parent=5 // pred_check
        %p196 = pneg %p195
      $region14: #{tpu_custom_call.1} parent=5 // pred_check_branch
        %198 = sbr.rel (%p196) target = $region16
      $region15: #{tpu_custom_call.1} parent=5 // pred_region
        // Predicated region
        $region17: #{tpu_custom_call.1} parent=15 // pred_check
          %p199 = pneg %p60
        $region18: #{tpu_custom_call.1} parent=15 // pred_check_branch
          %201 = sbr.rel (%p199) target = $region20
        $region19: #{tpu_custom_call.1} parent=15 // pred_region
          %s202 = sand.u32 %s50, 1
          %s203 = scalar_lea.sflag [#allocation3], %s202
          %s204 = sand.u32 %s50, 1
          %s205 = smul.addr %s204, 8
          %s206 = scalar_lea.vmem [#allocation2], %s205
          %s207 = sadd.s32 %s24, %s26
          %s208 = smul.u32 4, %s207
          %s210 = ssub.s32 128, 128
          %211 = vsyncadd %s203, %s210
          %s212 = smul.addr %s25, 8
          %s213 = sadd.s32 %s208, %s212
          %s214 = smul.addr %s213, 32
          %s215 = scalar_lea.hbm %s0, %s214
          %s217 = sshll.u32 %s206, 4
          %s218 = int_to_ptr.vmem [resolvable:$true] %s217
          %220 = dma.hbm_to_vmem [thread:$0]  %s215, 128, %s218, %s203
        $region20: #{tpu_custom_call.1} parent=15 // pred_fallthru
          _
        // Predicated region
        $region21: #{tpu_custom_call.1} parent=15 // pred_check
          %p221 = pneg %p90
        $region22: #{tpu_custom_call.1} parent=15 // pred_check_branch
          %223 = sbr.rel (%p221) target = $region24
        $region23: #{tpu_custom_call.1} parent=15 // pred_region
          %s224 = sand.u32 %s80, 1
          %s225 = scalar_lea.sflag [#allocation5], %s224
          %s226 = sand.u32 %s80, 1
          %s227 = smul.addr %s226, 8
          %s228 = scalar_lea.vmem [#allocation4], %s227
          %s229 = sadd.s32 %s24, %s26
          %s230 = smul.u32 4, %s229
          %s232 = ssub.s32 128, 128
          %233 = vsyncadd %s225, %s232
          %s234 = smul.addr %s25, 8
          %s235 = sadd.s32 %s230, %s234
          %s236 = smul.addr %s235, 32
          %s237 = scalar_lea.hbm %s1, %s236
          %s239 = sshll.u32 %s228, 4
          %s240 = int_to_ptr.vmem [resolvable:$true] %s239
          %242 = dma.hbm_to_vmem [thread:$0]  %s237, 128, %s240, %s225
        $region24: #{tpu_custom_call.1} parent=15 // pred_fallthru
          _
      $region16: #{tpu_custom_call.1} parent=5 // pred_fallthru
        _
      %p243 = scmp.le.s32.totalorder 1, %s17
      %p244 = scmp.lt.s32.totalorder %s17, 3
      %p245 = pnand %p243, %p244
      %p246 = pneg %p245
      // Predicated region
      $region25: #{tpu_custom_call.1} parent=5 // pred_check
        _
      $region26: #{tpu_custom_call.1} parent=5 // pred_check_branch
        %248 = sbr.rel (%p245) target = $region28
      $region27: #{tpu_custom_call.1} parent=5 // pred_region
        %s249 = ssub.s32 %s17, 1
        %s250 = sand.u32 %s53, 1
        %s251 = scalar_lea.sflag [#allocation3], %s250
        %s252 = sand.u32 %s53, 1
        %s253 = smul.addr %s252, 8
        %s254 = scalar_lea.vmem [#allocation2], %s253
        // Predicated region
        $region29: #{tpu_custom_call.1} parent=27 // pred_check
          %p255 = pneg %p66
        $region30: #{tpu_custom_call.1} parent=27 // pred_check_branch
          %257 = sbr.rel (%p255) target = $region32
        $region31: #{tpu_custom_call.1} parent=27 // pred_region
          %258 = dma.done %s251, 128
        $region32: #{tpu_custom_call.1} parent=27 // pred_fallthru
          _
        %s259 = sand.u32 %s83, 1
        %s260 = scalar_lea.sflag [#allocation5], %s259
        %s261 = sand.u32 %s83, 1
        %s262 = smul.addr %s261, 8
        %s263 = scalar_lea.vmem [#allocation4], %s262
        // Predicated region
        $region33: #{tpu_custom_call.1} parent=27 // pred_check
          %p264 = pneg %p96
        $region34: #{tpu_custom_call.1} parent=27 // pred_check_branch
          %266 = sbr.rel (%p264) target = $region36
        $region35: #{tpu_custom_call.1} parent=27 // pred_region
          %267 = dma.done %s260, 128
        $region36: #{tpu_custom_call.1} parent=27 // pred_fallthru
          _
        %s268 = sand.u32 %s53, 1
        %s269 = scalar_lea.sflag [#allocation3], %s268
        %s270 = sand.u32 %s53, 1
        %s271 = smul.addr %s270, 8
        %s272 = scalar_lea.vmem [#allocation2], %s271
        %p273 = pneg %p66
        %p274 = pneg %p63
        %s275 = sand.u32 %s83, 1
        %s276 = scalar_lea.sflag [#allocation5], %s275
        %s277 = sand.u32 %s83, 1
        %s278 = smul.addr %s277, 8
        %s279 = scalar_lea.vmem [#allocation4], %s278
        %p280 = pneg %p96
        %p281 = pneg %p93
        %p282 = pneg %p124
        %p283 = pneg %p121
        %p284 = scmp.lt.s32.totalorder %s27, 1
        %s285 = scalar_select %p284, %s27, 1
        %p286 = scmp.lt.s32.totalorder %s28, 0
        %s287 = scalar_select %p286, %s28, 0
        %s288 = sadd.s32 %s287, %s285
        %s289 = smul.addr %s288, 2
        %s290 = scalar_lea.vmem %s2, %s289
        %p291 = pneg %p152
        %p292 = pneg %p149
        %p293 = scmp.lt.s32.totalorder %s27, 1
        %s294 = scalar_select %p293, %s27, 1
        %p295 = scmp.lt.s32.totalorder %s28, 0
        %s296 = scalar_select %p295, %s28, 0
        %s297 = sadd.s32 %s296, %s294
        %s298 = smul.addr %s297, 2
        %s299 = scalar_lea.vmem %s3, %s298
        %p300 = pneg %p180
        %p301 = pneg %p177
        %p302 = scmp.lt.s32.totalorder %s27, 1
        %s303 = scalar_select %p302, %s27, 1
        %p304 = scmp.lt.s32.totalorder %s28, 0
        %s305 = scalar_select %p304, %s28, 0
        %s306 = sadd.s32 %s305, %s303
        %s307 = smul.addr %s306, 2
        %s308 = scalar_lea.vmem %s4, %s307
        %s309 = sadd.s32 %s27, %s29
        %s310 = smul.u32 4, %s309
        %s311 = sadd.s32 %s27, %s29
        %s312 = smul.u32 4, %s311
        %p313 = scmp.lt.s32.totalorder %s27, 1
        %s314 = scalar_select %p313, %s27, 1
        %p315 = scmp.lt.s32.totalorder %s28, 0
        %s316 = scalar_select %p315, %s28, 0
        %s317 = sadd.s32 %s316, %s314
        %s318 = smul.addr %s317, 2
        %s319 = scalar_lea.vmem %s2, %s318
        %p320 = scmp.lt.s32.totalorder %s27, 1
        %s321 = scalar_select %p320, %s27, 1
        %p322 = scmp.lt.s32.totalorder %s28, 0
        %s323 = scalar_select %p322, %s28, 0
        %s324 = sadd.s32 %s323, %s321
        %s325 = smul.addr %s324, 2
        %s326 = scalar_lea.vmem %s3, %s325
        %p327 = scmp.lt.s32.totalorder %s27, 1
        %s328 = scalar_select %p327, %s27, 1
        %p329 = scmp.lt.s32.totalorder %s28, 0
        %s330 = scalar_select %p329, %s28, 0
        %s331 = sadd.s32 %s330, %s328
        %s332 = smul.addr %s331, 2
        %s333 = scalar_lea.vmem %s4, %s332
        %p334 = scmp.eq.s32.totalorder %s29, 0
        // Predicated region
        $region37: #{tpu_custom_call.1} parent=27 // pred_check
          %p335 = pneg %p334
        $region38: #{tpu_custom_call.1} parent=27 // pred_check_branch
          %337 = sbr.rel (%p335) target = $region40
        $region39: #{tpu_custom_call.1} parent=27 // pred_region
          %vm338 = vcmask 1024
          %339 = vst.msk [vmem:[%s319] sm:$0x3] %vm338, 0.0
          %340 = vst.msk [vmem:[%s326] sm:$0x3] %vm338, 0.0
          %341 = vst.msk [vmem:[%s333] sm:$0x3] %vm338, 0.0
        $region40: #{tpu_custom_call.1} parent=27 // pred_fallthru
          _
        %v342 = vld [vmem:[%s254] sm:$0xff]
        %v343 = vld [vmem:[%s263] sm:$0xff]
        %v344 = vld [vmem:[%s319] sm:$0x3]
        %v345 = vmul.f32 %v342, %v343
        %v347 = vcombine.high %v345, %v345
        %v349 = vunpack.c.l.s4 1983009808
        %v350 = vunpack.c.0.s8 %v349
        %v351 = vlaneseq
        %v352 = vshrl.u32 %v351, 7
        %v353 = vsub.s32 %v350, %v352
        %v354 = vrot.slane %v345, %v353
        %v356 = vunpack.c.l.s4 1983009808
        %v357 = vunpack.c.0.s8 %v356
        %v358 = vlaneseq
        %v359 = vshrl.u32 %v358, 7
        %v360 = vsub.s32 %v357, %v359
        %v361 = vrot.slane %v347, %v360
        %v362 = vcombine.high %v354, %v354
        %v363 = vcombine.high %v361, %v361
        %vm368 = vcmask 1041408
        %v369 = vsel %vm368, %v354, 0.0
        %v370 = vsel %vm368, %v362, 0.0
        %v371 = vadd.f32 %v369, %v370
        %v372 = vsel %vm368, %v361, 0.0
        %v373 = vadd.f32 %v371, %v372
        %v374 = vsel %vm368, %v363, 0.0
        %v375 = vadd.f32 %v373, %v374
        %376 = vadd.xlane.f32.xlu0 %v375
        %v377 = vpop.xlane.xlu0 %376
        %v378 = vadd.f32 %v344, %v377
        %vm379 = vcmask 1024
        %380 = vst.msk [vmem:[%s319] sm:$0x3] %vm379, %v378
        %v381 = vld [vmem:[%s326] sm:$0x3]
        %v382 = vmul.f32 %v342, %v342
        %v384 = vcombine.high %v382, %v382
        %v386 = vunpack.c.l.s4 1983009808
        %v387 = vunpack.c.0.s8 %v386
        %v388 = vlaneseq
        %v389 = vshrl.u32 %v388, 7
        %v390 = vsub.s32 %v387, %v389
        %v391 = vrot.slane %v382, %v390
        %v393 = vunpack.c.l.s4 1983009808
        %v394 = vunpack.c.0.s8 %v393
        %v395 = vlaneseq
        %v396 = vshrl.u32 %v395, 7
        %v397 = vsub.s32 %v394, %v396
        %v398 = vrot.slane %v384, %v397
        %v399 = vcombine.high %v391, %v391
        %v400 = vcombine.high %v398, %v398
        %v405 = vsel %vm368, %v391, 0.0
        %v406 = vsel %vm368, %v399, 0.0
        %v407 = vadd.f32 %v405, %v406
        %v408 = vsel %vm368, %v398, 0.0
        %v409 = vadd.f32 %v407, %v408
        %v410 = vsel %vm368, %v400, 0.0
        %v411 = vadd.f32 %v409, %v410
        %412 = vadd.xlane.f32.xlu0 %v411
        %v413 = vpop.xlane.xlu0 %412
        %v414 = vadd.f32 %v381, %v413
        %415 = vst.msk [vmem:[%s326] sm:$0x3] %vm379, %v414
        %v416 = vld [vmem:[%s333] sm:$0x3]
        %v417 = vmul.f32 %v343, %v343
        %v419 = vcombine.high %v417, %v417
        %v421 = vunpack.c.l.s4 1983009808
        %v422 = vunpack.c.0.s8 %v421
        %v423 = vlaneseq
        %v424 = vshrl.u32 %v423, 7
        %v425 = vsub.s32 %v422, %v424
        %v426 = vrot.slane %v417, %v425
        %v428 = vunpack.c.l.s4 1983009808
        %v429 = vunpack.c.0.s8 %v428
        %v430 = vlaneseq
        %v431 = vshrl.u32 %v430, 7
        %v432 = vsub.s32 %v429, %v431
        %v433 = vrot.slane %v419, %v432
        %v434 = vcombine.high %v426, %v426
        %v435 = vcombine.high %v433, %v433
        %v440 = vsel %vm368, %v426, 0.0
        %v441 = vsel %vm368, %v434, 0.0
        %v442 = vadd.f32 %v440, %v441
        %v443 = vsel %vm368, %v433, 0.0
        %v444 = vadd.f32 %v442, %v443
        %v445 = vsel %vm368, %v435, 0.0
        %v446 = vadd.f32 %v444, %v445
        %447 = vadd.xlane.f32.xlu0 %v446
        %v448 = vpop.xlane.xlu0 %447
        %v449 = vadd.f32 %v416, %v448
        %450 = vst.msk [vmem:[%s333] sm:$0x3] %vm379, %v449
        %p451 = scmp.lt.s32.totalorder %s27, 1
        %s452 = scalar_select %p451, %s27, 1
        %p453 = scmp.lt.s32.totalorder %s28, 0
        %s454 = scalar_select %p453, %s28, 0
        %s455 = sadd.s32 %s454, %s452
        %s456 = smul.addr %s455, 2
        %s457 = scalar_lea.vmem %s2, %s456
        %p458 = scmp.lt.s32.totalorder %s27, 1
        %s459 = scalar_select %p458, %s27, 1
        %p460 = scmp.lt.s32.totalorder %s28, 0
        %s461 = scalar_select %p460, %s28, 0
        %s462 = sadd.s32 %s461, %s459
        %s463 = smul.addr %s462, 2
        %s464 = scalar_lea.vmem %s3, %s463
        %p465 = scmp.lt.s32.totalorder %s27, 1
        %s466 = scalar_select %p465, %s27, 1
        %p467 = scmp.lt.s32.totalorder %s28, 0
        %s468 = scalar_select %p467, %s28, 0
        %s469 = sadd.s32 %s468, %s466
        %s470 = smul.addr %s469, 2
        %s471 = scalar_lea.vmem %s4, %s470
        // Predicated region
        $region41: #{tpu_custom_call.1} parent=27 // pred_check
          %p472 = pneg %p121
        $region42: #{tpu_custom_call.1} parent=27 // pred_check_branch
          %474 = sbr.rel (%p472) target = $region44
        $region43: #{tpu_custom_call.1} parent=27 // pred_region
          _
        $region44: #{tpu_custom_call.1} parent=27 // pred_fallthru
          _
        // Predicated region
        $region45: #{tpu_custom_call.1} parent=27 // pred_check
          %p475 = pneg %p149
        $region46: #{tpu_custom_call.1} parent=27 // pred_check_branch
          %477 = sbr.rel (%p475) target = $region48
        $region47: #{tpu_custom_call.1} parent=27 // pred_region
          _
        $region48: #{tpu_custom_call.1} parent=27 // pred_fallthru
          _
        // Predicated region
        $region49: #{tpu_custom_call.1} parent=27 // pred_check
          %p478 = pneg %p177
        $region50: #{tpu_custom_call.1} parent=27 // pred_check_branch
          %480 = sbr.rel (%p478) target = $region52
        $region51: #{tpu_custom_call.1} parent=27 // pred_region
          _
        $region52: #{tpu_custom_call.1} parent=27 // pred_fallthru
          _
      $region28: #{tpu_custom_call.1} parent=5 // pred_fallthru
        _
      %p481 = scmp.le.s32.totalorder 2, %s17
      // Predicated region
      $region53: #{tpu_custom_call.1} parent=5 // pred_check
        %p482 = pneg %p481
      $region54: #{tpu_custom_call.1} parent=5 // pred_check_branch
        %484 = sbr.rel (%p482) target = $region56
      $region55: #{tpu_custom_call.1} parent=5 // pred_region
        %s485 = ssub.s32 %s17, 2
        // Predicated region
        $region57: #{tpu_custom_call.1} parent=55 // pred_check
          %p486 = pneg %p127
        $region58: #{tpu_custom_call.1} parent=55 // pred_check_branch
          %488 = sbr.rel (%p486) target = $region60
        $region59: #{tpu_custom_call.1} parent=55 // pred_region
          %p489 = scmp.lt.s32.totalorder %s30, 1
          %s490 = scalar_select %p489, %s30, 1
          %p491 = scmp.lt.s32.totalorder %s31, 0
          %s492 = scalar_select %p491, %s31, 0
          %s493 = sadd.s32 %s492, %s490
          %s494 = smul.addr %s493, 2
          %s495 = scalar_lea.vmem %s2, %s494
        $region60: #{tpu_custom_call.1} parent=55 // pred_fallthru
          _
        // Predicated region
        $region61: #{tpu_custom_call.1} parent=55 // pred_check
          %p496 = pneg %p155
        $region62: #{tpu_custom_call.1} parent=55 // pred_check_branch
          %498 = sbr.rel (%p496) target = $region64
        $region63: #{tpu_custom_call.1} parent=55 // pred_region
          %p499 = scmp.lt.s32.totalorder %s30, 1
          %s500 = scalar_select %p499, %s30, 1
          %p501 = scmp.lt.s32.totalorder %s31, 0
          %s502 = scalar_select %p501, %s31, 0
          %s503 = sadd.s32 %s502, %s500
          %s504 = smul.addr %s503, 2
          %s505 = scalar_lea.vmem %s3, %s504
        $region64: #{tpu_custom_call.1} parent=55 // pred_fallthru
          _
        // Predicated region
        $region65: #{tpu_custom_call.1} parent=55 // pred_check
          %p506 = pneg %p183
        $region66: #{tpu_custom_call.1} parent=55 // pred_check_branch
          %508 = sbr.rel (%p506) target = $region68
        $region67: #{tpu_custom_call.1} parent=55 // pred_region
          %p509 = scmp.lt.s32.totalorder %s30, 1
          %s510 = scalar_select %p509, %s30, 1
          %p511 = scmp.lt.s32.totalorder %s31, 0
          %s512 = scalar_select %p511, %s31, 0
          %s513 = sadd.s32 %s512, %s510
          %s514 = smul.addr %s513, 2
          %s515 = scalar_lea.vmem %s4, %s514
        $region68: #{tpu_custom_call.1} parent=55 // pred_fallthru
          _
      $region56: #{tpu_custom_call.1} parent=5 // pred_fallthru
        _
    $region6: #{tpu_custom_call.1} parent=1 // loop_footer
      %s21 = sadd.s32 1, %s17
    $region7: #{tpu_custom_call.1} parent=1 // loop_footer_branch
      %16 = sbr.rel target = $region3
    $region8: #{tpu_custom_call.1} parent=1 // loop_exit
      _
    %516 = vsyncpa [#allocation3], 1
    %s517 = scalar_lea.sflag [#allocation3], 1
    %518 = vsyncpa %s517, 1
    %519 = vsyncpa [#allocation5], 1
    %s520 = scalar_lea.sflag [#allocation5], 1
    %521 = vsyncpa %s520, 1

</llo_original>
